<compile_context>
chip_gen: v6e
topology: v6e:2x2x1
jax: 0.10.0
libtpu: 0.0.40
codegen_flags: <defaults>
</compile_context>

<pallas_src>
import jax
import jax.numpy as jnp
from jax import lax
from jax.experimental import pallas as pl
from jax.experimental.pallas import tpu as pltpu


def _round_up(x: int, m: int) -> int:
    return ((x + m - 1) // m) * m


# ---------------------------------------------------------------------------
# Kernel 1: grouped row-gather (exact; default path).
# ---------------------------------------------------------------------------
def _embedding_gather_kernel(ids_ref, emb_ref, out_ref, stage_ref):
    """Gather one tile of token rows from the embedding table.

    ids_ref   : SMEM int32[N_padded]      (scalar-prefetched full id vector)
    emb_ref   : VMEM [V, D]               (full table, resident across grid)
    out_ref   : VMEM [TILE_N, D]          (this tile's output block)
    stage_ref : VMEM [GROUP, D] scratch   (row-group staging buffer)
    """
    tile_n, _ = out_ref.shape
    group = stage_ref.shape[0]
    base = pl.program_id(0) * tile_n

    def group_body(g, carry):
        row0 = pl.multiple_of(g * group, group)

        # Gather GROUP rows into the staging tile (short, fully unrolled).
        def row_body(r, carry2):
            tok = ids_ref[base + row0 + r]        # scalar id read from SMEM
            stage_ref[r, :] = emb_ref[tok, :]     # dynamic row copy VMEM->VMEM
            return carry2

        lax.fori_loop(0, group, row_body, 0, unroll=True)

        # One dense, sublane-aligned (GROUP, D) store instead of GROUP masked
        # [1, D] partial stores.
        out_ref[pl.ds(row0, group), :] = stage_ref[...]
        return carry

    lax.fori_loop(0, tile_n // group, group_body, 0)


# ---------------------------------------------------------------------------
# Kernel 2: one-hot MXU gather (small vocabularies).
# ---------------------------------------------------------------------------
def _embedding_onehot_kernel(ids_ref, emb_ref, out_ref):
    """out[t, :] = emb[ids[t], :] computed as onehot(ids) @ emb on the MXU.

    ids_ref : VMEM int32[TILE_N, 1]
    emb_ref : VMEM [V, D]
    out_ref : VMEM [TILE_N, D]
    """
    v = emb_ref.shape[0]
    tile_n = out_ref.shape[0]
    ids = ids_ref[...]                                          # (TILE_N, 1)
    col = lax.broadcasted_iota(jnp.int32, (tile_n, v), 1)       # vocab index
    onehot = (col == ids).astype(emb_ref.dtype)                 # (TILE_N, V)
    out_ref[...] = jnp.dot(
        onehot, emb_ref[...], preferred_element_type=jnp.float32
    ).astype(out_ref.dtype)


# ---------------------------------------------------------------------------
# Wrapper
# ---------------------------------------------------------------------------
def embedding_forward(
    embeddings: jax.Array,
    token_ids: jax.Array,
    *,
    tile_n: int = 256,
    mode: str = "auto",          # "auto" | "gather" | "onehot"
    onehot_max_vocab: int = 2048,
) -> jax.Array:
    """Equivalent of torch: embeddings[token_ids].

    embeddings: [V, D]
    token_ids : any integer shape
    returns   : token_ids.shape + (D,)
    """
    V, D = embeddings.shape
    dtype = embeddings.dtype
    itemsize = jnp.dtype(dtype).itemsize

    # Clamp ids (torch raises on OOB; we avoid silent garbage reads instead).
    ids_flat = jnp.clip(token_ids.reshape(-1).astype(jnp.int32), 0, V - 1)
    n = ids_flat.shape[0]

    # Path selection.  The one-hot MXU gather is bit-exact only when the table
    # dtype is natively handled by the MXU (bf16); for f32 tables the exact
    # row-gather path preserves torch's exact-indexing semantics.
    if mode == "auto":
        use_onehot = (V <= onehot_max_vocab) and (dtype == jnp.bfloat16)
    else:
        use_onehot = mode == "onehot"

    # Token-tile size: multiple of the row group (sublane packing of dtype),
    # capped at `tile_n`, padded so the grid divides evenly.
    group = max(8, 32 // itemsize)                 # 8 rows f32, 16 rows bf16
    tn = min(tile_n, _round_up(n, group))
    n_pad = _round_up(n, tn)
    ids_padded = jnp.pad(ids_flat, (0, n_pad - n))
    num_tiles = n_pad // tn

    # VMEM budget: resident table + double-buffered output tile (+ one-hot
    # intermediates) with slack.  Never lower below the 32 MiB default.
    table_bytes = V * D * itemsize
    tile_bytes = tn * D * itemsize
    onehot_bytes = tn * V * 8 if use_onehot else 0
    needed = table_bytes + 2 * tile_bytes + onehot_bytes + (4 << 20)
    vmem_limit = int(min(max(needed, 32 << 20), 100 << 20))

    compiler_params = pltpu.CompilerParams(
        dimension_semantics=("parallel",),          # megacore: split token tiles
        vmem_limit_bytes=vmem_limit,
    )
    out_shape = jax.ShapeDtypeStruct((n_pad, D), dtype)

    if use_onehot:
        out_padded = pl.pallas_call(
            _embedding_onehot_kernel,
            out_shape=out_shape,
            grid=(num_tiles,),
            in_specs=[
                pl.BlockSpec((tn, 1), lambda i: (i, 0)),   # id column per tile
                pl.BlockSpec((V, D), lambda i: (0, 0)),    # full table, resident
            ],
            out_specs=pl.BlockSpec((tn, D), lambda i: (i, 0)),
            compiler_params=compiler_params,
        )(ids_padded.reshape(n_pad, 1), embeddings)
    else:
        grid_spec = pltpu.PrefetchScalarGridSpec(
            num_scalar_prefetch=1,                         # ids -> SMEM
            grid=(num_tiles,),
            in_specs=[pl.BlockSpec((V, D), lambda i, ids: (0, 0))],
            out_specs=pl.BlockSpec((tn, D), lambda i, ids: (i, 0)),
            scratch_shapes=[pltpu.VMEM((group, D), dtype)],
        )
        out_padded = pl.pallas_call(
            _embedding_gather_kernel,
            out_shape=out_shape,
            grid_spec=grid_spec,
            compiler_params=compiler_params,
        )(ids_padded, embeddings)

    return out_padded[:n].reshape(token_ids.shape + (D,))


def init_embedding_table(key, num_embeddings: int, embedding_dim: int,
                         dtype=jnp.float32) -> jax.Array:
    # Matches nn.init.trunc_normal_(std=1.0, a=-3.0, b=3.0): standard normal
    # truncated to [-3, 3].
    return jax.random.truncated_normal(
        key, lower=-3.0, upper=3.0,
        shape=(num_embeddings, embedding_dim), dtype=jnp.float32
    ).astype(dtype)


if __name__ == "__main__":
    key = jax.random.PRNGKey(0)
    k_emb, k_ids, k_ids_big = jax.random.split(key, 3)

    num_embeddings = 64
    embedding_dim = 128
    batch, seq = 2, 8

    emb_f32 = init_embedding_table(k_emb, num_embeddings, embedding_dim)
    ids_small = jax.random.randint(k_ids, (batch, seq), 0, num_embeddings,
                                   dtype=jnp.int32)
    ids_big = jax.random.randint(k_ids_big, (4, 96), 0, num_embeddings,
                                 dtype=jnp.int32)

    # 1) f32 table -> grouped row-gather path (exact), single tile.
    out = jax.block_until_ready(embedding_forward(emb_f32, ids_small))
    ref = emb_f32[ids_small]
    assert out.shape == (batch, seq, embedding_dim)
    assert jnp.allclose(out, ref), "gather path (single tile) mismatch"

    # 2) f32 table, more tokens -> multi-tile grid + padding on gather path.
    out2 = jax.block_until_ready(embedding_forward(emb_f32, ids_big))
    ref2 = emb_f32[ids_big]
    assert out2.shape == (4, 96, embedding_dim)
    assert jnp.allclose(out2, ref2), "gather path (multi tile) mismatch"

    # 3) bf16 table -> one-hot MXU path (exact for bf16 operands).
    emb_bf16 = emb_f32.astype(jnp.bfloat16)
    out3 = jax.block_until_ready(embedding_forward(emb_bf16, ids_small))
    ref3 = emb_bf16[ids_small]
    assert out3.shape == (batch, seq, embedding_dim)
    assert jnp.allclose(out3.astype(jnp.float32), ref3.astype(jnp.float32)), \
        "one-hot path (single tile) mismatch"

    # 4) bf16 table, multi-tile one-hot path.
    out4 = jax.block_until_ready(embedding_forward(emb_bf16, ids_big))
    ref4 = emb_bf16[ids_big]
    assert jnp.allclose(out4.astype(jnp.float32), ref4.astype(jnp.float32)), \
        "one-hot path (multi tile) mismatch"

    print("KERNEL_OK")
</pallas_src>

<mosaic_0001>
module attributes {stable_mosaic.version = 11 : i64} {
  func.func @_embedding_gather_kernel(%arg0: i32, %arg1: memref<16xi32, #tpu.memory_space<smem>>, %arg2: memref<64x128xf32, #tpu.memory_space<vmem>>, %arg3: memref<16x128xf32, #tpu.memory_space<vmem>>, %arg4: memref<8x128xf32, #tpu.memory_space<vmem>>) attributes {dimension_semantics = [#tpu.dimension_semantics<parallel>], iteration_bounds = array<i64: 1>, scalar_prefetch = 1 : i64, scratch_operands = 1 : i64, tpu.core_type = #tpu.core_type<tc>, window_params = [{pipeline_mode = #tpu.pipeline_mode<synchronous>, transform_indices = @transform_0, window_bounds = array<i64: 64, 128>}, {transform_indices = @transform_1, window_bounds = array<i64: 16, 128>}]} {
    %c16_i32 = arith.constant 16 : i32
    %0 = arith.muli %arg0, %c16_i32 : i32
    %c0_i32 = arith.constant 0 : i32
    %c2_i32 = arith.constant 2 : i32
    %1 = arith.addi %c0_i32, %c2_i32 : i32
    %c1_i32 = arith.constant 1 : i32
    scf.for %arg5 = %c0_i32 to %1 step %c1_i32  : i32 {
      %c8_i32 = arith.constant 8 : i32
      %2 = arith.muli %arg5, %c8_i32 : i32
      %3 = tpu.assume_multiple %2, 8 : i32
      %c0_i32_1 = arith.constant 0 : i32
      %4 = arith.addi %0, %3 : i32
      %5 = arith.addi %4, %c0_i32_1 : i32
      %6 = arith.index_cast %5 : i32 to index
      %7 = memref.load %arg1[%6] : memref<16xi32, #tpu.memory_space<smem>>
      %8 = arith.index_cast %7 : i32 to index
      %c0 = arith.constant 0 : index
      %9 = vector.load %arg2[%8, %c0] : memref<64x128xf32, #tpu.memory_space<vmem>>, vector<1x128xf32>
      %10 = vector.shape_cast %9 : vector<1x128xf32> to vector<128xf32>
      %11 = arith.index_cast %c0_i32_1 : i32 to index
      %c0_2 = arith.constant 0 : index
      %12 = vector.load %arg4[%11, %c0_2] : memref<8x128xf32, #tpu.memory_space<vmem>>, vector<1x128xf32>
      %13 = vector.shape_cast %12 : vector<1x128xf32> to vector<128xf32>
      %14 = vector.shape_cast %10 : vector<128xf32> to vector<1x128xf32>
      tpu.vector_store %arg4[%11, %c0_2], %14 {strides = array<i32>} : memref<8x128xf32, #tpu.memory_space<vmem>>, vector<1x128xf32>,
      %c1_i32_3 = arith.constant 1 : i32
      %15 = arith.addi %0, %3 : i32
      %16 = arith.addi %15, %c1_i32_3 : i32
      %17 = arith.index_cast %16 : i32 to index
      %18 = memref.load %arg1[%17] : memref<16xi32, #tpu.memory_space<smem>>
      %19 = arith.index_cast %18 : i32 to index
      %c0_4 = arith.constant 0 : index
      %20 = vector.load %arg2[%19, %c0_4] : memref<64x128xf32, #tpu.memory_space<vmem>>, vector<1x128xf32>
      %21 = vector.shape_cast %20 : vector<1x128xf32> to vector<128xf32>
      %22 = arith.index_cast %c1_i32_3 : i32 to index
      %c0_5 = arith.constant 0 : index
      %23 = vector.load %arg4[%22, %c0_5] : memref<8x128xf32, #tpu.memory_space<vmem>>, vector<1x128xf32>
      %24 = vector.shape_cast %23 : vector<1x128xf32> to vector<128xf32>
      %25 = vector.shape_cast %21 : vector<128xf32> to vector<1x128xf32>
      tpu.vector_store %arg4[%22, %c0_5], %25 {strides = array<i32>} : memref<8x128xf32, #tpu.memory_space<vmem>>, vector<1x128xf32>,
      %c2_i32_6 = arith.constant 2 : i32
      %26 = arith.addi %0, %3 : i32
      %27 = arith.addi %26, %c2_i32_6 : i32
      %28 = arith.index_cast %27 : i32 to index
      %29 = memref.load %arg1[%28] : memref<16xi32, #tpu.memory_space<smem>>
      %30 = arith.index_cast %29 : i32 to index
      %c0_7 = arith.constant 0 : index
      %31 = vector.load %arg2[%30, %c0_7] : memref<64x128xf32, #tpu.memory_space<vmem>>, vector<1x128xf32>
      %32 = vector.shape_cast %31 : vector<1x128xf32> to vector<128xf32>
      %33 = arith.index_cast %c2_i32_6 : i32 to index
      %c0_8 = arith.constant 0 : index
      %34 = vector.load %arg4[%33, %c0_8] : memref<8x128xf32, #tpu.memory_space<vmem>>, vector<1x128xf32>
      %35 = vector.shape_cast %34 : vector<1x128xf32> to vector<128xf32>
      %36 = vector.shape_cast %32 : vector<128xf32> to vector<1x128xf32>
      tpu.vector_store %arg4[%33, %c0_8], %36 {strides = array<i32>} : memref<8x128xf32, #tpu.memory_space<vmem>>, vector<1x128xf32>,
      %c3_i32 = arith.constant 3 : i32
      %37 = arith.addi %0, %3 : i32
      %38 = arith.addi %37, %c3_i32 : i32
      %39 = arith.index_cast %38 : i32 to index
      %40 = memref.load %arg1[%39] : memref<16xi32, #tpu.memory_space<smem>>
      %41 = arith.index_cast %40 : i32 to index
      %c0_9 = arith.constant 0 : index
      %42 = vector.load %arg2[%41, %c0_9] : memref<64x128xf32, #tpu.memory_space<vmem>>, vector<1x128xf32>
      %43 = vector.shape_cast %42 : vector<1x128xf32> to vector<128xf32>
      %44 = arith.index_cast %c3_i32 : i32 to index
      %c0_10 = arith.constant 0 : index
      %45 = vector.load %arg4[%44, %c0_10] : memref<8x128xf32, #tpu.memory_space<vmem>>, vector<1x128xf32>
      %46 = vector.shape_cast %45 : vector<1x128xf32> to vector<128xf32>
      %47 = vector.shape_cast %43 : vector<128xf32> to vector<1x128xf32>
      tpu.vector_store %arg4[%44, %c0_10], %47 {strides = array<i32>} : memref<8x128xf32, #tpu.memory_space<vmem>>, vector<1x128xf32>,
      %c4_i32 = arith.constant 4 : i32
      %48 = arith.addi %0, %3 : i32
      %49 = arith.addi %48, %c4_i32 : i32
      %50 = arith.index_cast %49 : i32 to index
      %51 = memref.load %arg1[%50] : memref<16xi32, #tpu.memory_space<smem>>
      %52 = arith.index_cast %51 : i32 to index
      %c0_11 = arith.constant 0 : index
      %53 = vector.load %arg2[%52, %c0_11] : memref<64x128xf32, #tpu.memory_space<vmem>>, vector<1x128xf32>
      %54 = vector.shape_cast %53 : vector<1x128xf32> to vector<128xf32>
      %55 = arith.index_cast %c4_i32 : i32 to index
      %c0_12 = arith.constant 0 : index
      %56 = vector.load %arg4[%55, %c0_12] : memref<8x128xf32, #tpu.memory_space<vmem>>, vector<1x128xf32>
      %57 = vector.shape_cast %56 : vector<1x128xf32> to vector<128xf32>
      %58 = vector.shape_cast %54 : vector<128xf32> to vector<1x128xf32>
      tpu.vector_store %arg4[%55, %c0_12], %58 {strides = array<i32>} : memref<8x128xf32, #tpu.memory_space<vmem>>, vector<1x128xf32>,
      %c5_i32 = arith.constant 5 : i32
      %59 = arith.addi %0, %3 : i32
      %60 = arith.addi %59, %c5_i32 : i32
      %61 = arith.index_cast %60 : i32 to index
      %62 = memref.load %arg1[%61] : memref<16xi32, #tpu.memory_space<smem>>
      %63 = arith.index_cast %62 : i32 to index
      %c0_13 = arith.constant 0 : index
      %64 = vector.load %arg2[%63, %c0_13] : memref<64x128xf32, #tpu.memory_space<vmem>>, vector<1x128xf32>
      %65 = vector.shape_cast %64 : vector<1x128xf32> to vector<128xf32>
      %66 = arith.index_cast %c5_i32 : i32 to index
      %c0_14 = arith.constant 0 : index
      %67 = vector.load %arg4[%66, %c0_14] : memref<8x128xf32, #tpu.memory_space<vmem>>, vector<1x128xf32>
      %68 = vector.shape_cast %67 : vector<1x128xf32> to vector<128xf32>
      %69 = vector.shape_cast %65 : vector<128xf32> to vector<1x128xf32>
      tpu.vector_store %arg4[%66, %c0_14], %69 {strides = array<i32>} : memref<8x128xf32, #tpu.memory_space<vmem>>, vector<1x128xf32>,
      %c6_i32 = arith.constant 6 : i32
      %70 = arith.addi %0, %3 : i32
      %71 = arith.addi %70, %c6_i32 : i32
      %72 = arith.index_cast %71 : i32 to index
      %73 = memref.load %arg1[%72] : memref<16xi32, #tpu.memory_space<smem>>
      %74 = arith.index_cast %73 : i32 to index
      %c0_15 = arith.constant 0 : index
      %75 = vector.load %arg2[%74, %c0_15] : memref<64x128xf32, #tpu.memory_space<vmem>>, vector<1x128xf32>
      %76 = vector.shape_cast %75 : vector<1x128xf32> to vector<128xf32>
      %77 = arith.index_cast %c6_i32 : i32 to index
      %c0_16 = arith.constant 0 : index
      %78 = vector.load %arg4[%77, %c0_16] : memref<8x128xf32, #tpu.memory_space<vmem>>, vector<1x128xf32>
      %79 = vector.shape_cast %78 : vector<1x128xf32> to vector<128xf32>
      %80 = vector.shape_cast %76 : vector<128xf32> to vector<1x128xf32>
      tpu.vector_store %arg4[%77, %c0_16], %80 {strides = array<i32>} : memref<8x128xf32, #tpu.memory_space<vmem>>, vector<1x128xf32>,
      %c7_i32 = arith.constant 7 : i32
      %81 = arith.addi %0, %3 : i32
      %82 = arith.addi %81, %c7_i32 : i32
      %83 = arith.index_cast %82 : i32 to index
      %84 = memref.load %arg1[%83] : memref<16xi32, #tpu.memory_space<smem>>
      %85 = arith.index_cast %84 : i32 to index
      %c0_17 = arith.constant 0 : index
      %86 = vector.load %arg2[%85, %c0_17] : memref<64x128xf32, #tpu.memory_space<vmem>>, vector<1x128xf32>
      %87 = vector.shape_cast %86 : vector<1x128xf32> to vector<128xf32>
      %88 = arith.index_cast %c7_i32 : i32 to index
      %c0_18 = arith.constant 0 : index
      %89 = vector.load %arg4[%88, %c0_18] : memref<8x128xf32, #tpu.memory_space<vmem>>, vector<1x128xf32>
      %90 = vector.shape_cast %89 : vector<1x128xf32> to vector<128xf32>
      %91 = vector.shape_cast %87 : vector<128xf32> to vector<1x128xf32>
      tpu.vector_store %arg4[%88, %c0_18], %91 {strides = array<i32>} : memref<8x128xf32, #tpu.memory_space<vmem>>, vector<1x128xf32>,
      %c8_i32_19 = arith.constant 8 : i32
      %c0_20 = arith.constant 0 : index
      %c0_21 = arith.constant 0 : index
      %92 = vector.load %arg4[%c0_20, %c0_21] : memref<8x128xf32, #tpu.memory_space<vmem>>, vector<8x128xf32>
      %93 = arith.index_cast %3 : i32 to index
      %c0_22 = arith.constant 0 : index
      %94 = vector.load %arg3[%93, %c0_22] : memref<16x128xf32, #tpu.memory_space<vmem>>, vector<8x128xf32>
      tpu.vector_store %arg3[%93, %c0_22], %92 {strides = array<i32>} : memref<16x128xf32, #tpu.memory_space<vmem>>, vector<8x128xf32>,
    }
    %c2_i32_0 = arith.constant 2 : i32
    return
  }
  func.func @transform_0(%arg0: i32, %arg1: memref<16xi32, #tpu.memory_space<smem>>) -> (i32, i32) {
    %c0_i32 = arith.constant 0 : i32
    %c0_i32_0 = arith.constant 0 : i32
    %c0_i32_1 = arith.constant 0 : i32
    return %c0_i32, %c0_i32_0 : i32, i32
  }
  func.func @transform_1(%arg0: i32, %arg1: memref<16xi32, #tpu.memory_space<smem>>) -> (i32, i32) {
    %c0_i32 = arith.constant 0 : i32
    %c0_i32_0 = arith.constant 0 : i32
    return %arg0, %c0_i32 : i32, i32
  }
}

</mosaic_0001>

<llo_original>
// kernel: tpu_custom_call.1
$region0: #{tpu_custom_call.1}
  #allocation0 [shape = 'u32[]', space=smem, size = 0x4, offset = 0x4, fixed_abs, tag = 'smem constant byte address 0x4 - core index']
  #allocation1 [shape = 'u32[144,128]{1,0:T(1,128)}', space=vmem, size = 0x12000, scoped, tag = 'internal scratch']
  #allocation2 [shape = 'f32[8,128]{1,0:T(8,128)}', space=vmem, size = 0x1000, scoped, tag = 'scratch operand']
  #allocation3 [shape = 's32[1]{0}', space=sflag, size = 0x4, scoped, tag = 'scoped memory for tpu_custom_call.1']
  #allocation4 [shape = 'u8[512]{0}', space=smem, size = 0x200, scoped, tag = 'prefetched SMEM operand 0']
  %s0 = inlined_call_operand.hbm [shape: s32[16], index: 0, kind: input, shape index: {}]
  %s1 = inlined_call_operand.hbm [shape: f32[64,128], index: 1, kind: input, shape index: {}]
  %s2 = inlined_call_operand.hbm [shape: f32[16,128], index: 2, kind: output, shape index: {}]
  %s3 = sld [smem:[#allocation0]]
  $region25: #{tpu_custom_call.1} parent=0
    _
  %s5 = ssub.s32 1, %s3
  %s6 = scalar_select 0, %s5, %s3
  %8 = dma.hbm_to_smem %s0, 16, [#allocation4], [#allocation3]
  %9 = dma.done [#allocation3], 16
  %10 = sfence
  $region1: #{tpu_custom_call.1} parent=0
    #allocation5 [shape = 'u8[32768]{0}', space=vmem, size = 0x8000, scoped, tag = 'input window, operand 1, single buffered']
    #allocation6 [shape = 's32[1]{0}', space=sflag, size = 0x4, scoped, tag = 'scoped memory for tpu_custom_call.1']
    #allocation7 [shape = 's32[1]{0}', space=sflag, size = 0x4, scoped, tag = 'scoped memory for tpu_custom_call.1']
    #allocation8 [shape = 'u8[8192]{0}', space=vmem, size = 0x2000, scoped, tag = 'output window, operand 0, single buffered']
    %11 = vsyncpa [#allocation6], 0
    %12 = vsyncpa [#allocation7], 0
    // Predicated region
    $region2: #{tpu_custom_call.1} parent=1 // pred_check
      _
    $region3: #{tpu_custom_call.1} parent=1 // pred_check_branch
      %14 = sbr.rel (0) target = $region5
    $region4: #{tpu_custom_call.1} parent=1 // pred_region
      %s16 = ssub.s32 1024, 1024
      %17 = vsyncadd [#allocation6], %s16
      %s18 = sshll.u32 [#allocation5], 4
      %s19 = int_to_ptr.vmem [resolvable:$true] %s18
      %24 = dma.hbm_to_vmem [thread:$0]  %s1, 1024, %s19, [#allocation6], 128, 128, 8
    $region5: #{tpu_custom_call.1} parent=1 // pred_fallthru
      _
    // Predicated region
    $region6: #{tpu_custom_call.1} parent=1 // pred_check
      _
    $region7: #{tpu_custom_call.1} parent=1 // pred_check_branch
      %26 = sbr.rel (0) target = $region9
    $region8: #{tpu_custom_call.1} parent=1 // pred_region
      %27 = dma.done [#allocation6], 1024
    $region9: #{tpu_custom_call.1} parent=1 // pred_fallthru
      _
    %s28 = smul.u32 0, 16
    loop: start=0, step=1, limit=2
    $region10: #{tpu_custom_call.1} parent=1 // loop_pre_header
      _
    $region11: #{tpu_custom_call.1} parent=1 // loop_header
      %s30 = sphi 0, %s34
      %p31 = scmp.ge.s32.totalorder %s30, 2
    $region12: #{tpu_custom_call.1} parent=1 // loop_header_branch
      %33 = sbr.rel (%p31) target = $region16
    $region13: #{tpu_custom_call.1} parent=1 // loop_body
      %s35 = smul.u32 %s30, 8
      %s36 = sadd.s32 %s28, %s35
      %s37 = sld [smem:[#allocation4 + %s36]]
      %s38 = scalar_lea.vmem [#allocation5], %s37
      %v39 = vld [vmem:[%s38] sm:$0x1]
      %40 = vst [vmem:[#allocation2] sm:$0x1] %v39
      %s41 = sadd.s32 %s36, 1
      %s42 = sld [smem:[#allocation4 + %s41]]
      %s43 = scalar_lea.vmem [#allocation5], %s42
      %v44 = vld [vmem:[%s43] sm:$0x1]
      %45 = vst [vmem:[#allocation2 + $0x1] sm:$0x1] %v44
      %s46 = sadd.s32 %s36, 2
      %s47 = sld [smem:[#allocation4 + %s46]]
      %s48 = scalar_lea.vmem [#allocation5], %s47
      %v49 = vld [vmem:[%s48] sm:$0x1]
      %50 = vst [vmem:[#allocation2 + $0x2] sm:$0x1] %v49
      %s51 = sadd.s32 %s36, 3
      %s52 = sld [smem:[#allocation4 + %s51]]
      %s53 = scalar_lea.vmem [#allocation5], %s52
      %v54 = vld [vmem:[%s53] sm:$0x1]
      %55 = vst [vmem:[#allocation2 + $0x3] sm:$0x1] %v54
      %s56 = sadd.s32 %s36, 4
      %s57 = sld [smem:[#allocation4 + %s56]]
      %s58 = scalar_lea.vmem [#allocation5], %s57
      %v59 = vld [vmem:[%s58] sm:$0x1]
      %60 = vst [vmem:[#allocation2 + $0x4] sm:$0x1] %v59
      %s61 = sadd.s32 %s36, 5
      %s62 = sld [smem:[#allocation4 + %s61]]
      %s63 = scalar_lea.vmem [#allocation5], %s62
      %v64 = vld [vmem:[%s63] sm:$0x1]
      %65 = vst [vmem:[#allocation2 + $0x5] sm:$0x1] %v64
      %s66 = sadd.s32 %s36, 6
      %s67 = sld [smem:[#allocation4 + %s66]]
      %s68 = scalar_lea.vmem [#allocation5], %s67
      %v69 = vld [vmem:[%s68] sm:$0x1]
      %70 = vst [vmem:[#allocation2 + $0x6] sm:$0x1] %v69
      %s71 = sadd.s32 %s36, 7
      %s72 = sld [smem:[#allocation4 + %s71]]
      %s73 = scalar_lea.vmem [#allocation5], %s72
      %v74 = vld [vmem:[%s73] sm:$0x1]
      %75 = vst [vmem:[#allocation2 + $0x7] sm:$0x1] %v74
      %v76 = vld [vmem:[#allocation2] sm:$0xff]
      %s77 = scalar_lea.vmem [#allocation8], %s35
      %78 = vst [vmem:[%s77] sm:$0xff] %v76
    $region14: #{tpu_custom_call.1} parent=1 // loop_footer
      %s34 = sadd.s32 1, %s30
    $region15: #{tpu_custom_call.1} parent=1 // loop_footer_branch
      %29 = sbr.rel target = $region11
    $region16: #{tpu_custom_call.1} parent=1 // loop_exit
      _
    // Predicated region
    $region17: #{tpu_custom_call.1} parent=1 // pred_check
      _
    $region18: #{tpu_custom_call.1} parent=1 // pred_check_branch
      %80 = sbr.rel (0) target = $region20
    $region19: #{tpu_custom_call.1} parent=1 // pred_region
      %s82 = ssub.s32 256, 256
      %83 = vsyncadd [#allocation7], %s82
      %s84 = sshll.u32 [#allocation8], 4
      %s85 = int_to_ptr.vmem [resolvable:$true] %s84
      %90 = dma.vmem_to_hbm [thread:$0]  %s85, 256, %s2, [#allocation7], 128, 128, 8
    $region20: #{tpu_custom_call.1} parent=1 // pred_fallthru
      _
    // Predicated region
    $region21: #{tpu_custom_call.1} parent=1 // pred_check
      _
    $region22: #{tpu_custom_call.1} parent=1 // pred_check_branch
      %92 = sbr.rel (0) target = $region24
    $region23: #{tpu_custom_call.1} parent=1 // pred_region
      %93 = dma.done [#allocation7], 256
    $region24: #{tpu_custom_call.1} parent=1 // pred_fallthru
      _
    %94 = vsyncpa [#allocation6], 1
    %95 = vsyncpa [#allocation7], 1

</llo_original>
